<compile_context>
chip_gen: v7x
topology: tpu7x:2x2x1
jax: 0.10.0
libtpu: 0.0.40
codegen_flags: <defaults>
</compile_context>

<pallas_src>
import jax
import jax.numpy as jnp
from jax.experimental import pallas as pl
from jax.experimental.pallas import tpu as pltpu


def _complex_conv1d_kernel(w_ref, x_ref, o_ref):
    """One fused matmul per grid step.

    w_ref: (C_out, C_in)  fused block weight [[wr, -wi], [wi, wr]]
    x_ref: (C_in, BL)     lane-dense input slab
    o_ref: (C_out, BL)    output slab
    """
    o_ref[...] = jnp.dot(
        w_ref[...], x_ref[...], preferred_element_type=jnp.float32
    ).astype(o_ref.dtype)


def _pick_block_l(length, c_in, c_out, in_itemsize, out_itemsize, budget_bytes):
    """Largest lane tile whose double-buffered in+out blocks fit `budget_bytes`."""
    per_lane = 2 * (c_in * in_itemsize + c_out * out_itemsize)  # 2x = double buffer
    bl = budget_bytes // per_lane
    bl = max(128, (bl // 128) * 128)
    if bl >= length:
        return int(length)  # full-extent last block dim: always legal
    return int(bl)


def _squeeze_w(w):
    """Accept (Co, Ci) or PyTorch-style (Co, Ci, kernel_size=1)."""
    if w.ndim == 3:
        assert w.shape[-1] == 1, "only kernel_size=1 is supported"
        return w[:, :, 0]
    return w


def complex_conv1d(
    x,
    w_real,
    w_imag,
    *,
    out_dtype=None,
    compute_dtype=None,
    block_l=None,
    small_l_fold_threshold=512,
    vmem_block_budget_bytes=24 * 1024 * 1024,
):
    """Pallas ComplexConv1d forward (kernel_size=1, stride=1, padding=0, bias=False).

    x      : (N, C_in, L), channels = [real | imag]
    w_real : (Co_half, Ci_half) or (Co_half, Ci_half, 1)
    w_imag : same shape as w_real
    returns: (N, 2*Co_half, L)
    """
    w_real = _squeeze_w(w_real)
    w_imag = _squeeze_w(w_imag)

    N, C_in, L = x.shape
    co_half, ci_half = w_real.shape
    assert C_in == 2 * ci_half, "input channels must be 2 * Ci_half"
    C_out = 2 * co_half

    if compute_dtype is not None and x.dtype != compute_dtype:
        # NOTE: prefer storing x in bf16 upstream; this cast is an extra HBM pass.
        x = x.astype(compute_dtype)
    in_dtype = x.dtype
    if out_dtype is None:
        out_dtype = in_dtype
    in_itemsize = jnp.dtype(in_dtype).itemsize
    out_itemsize = jnp.dtype(out_dtype).itemsize

    # Fused block weight:  [out_real; out_imag] = [[wr, -wi], [wi, wr]] @ [real; imag]
    w = jnp.concatenate(
        [
            jnp.concatenate([w_real, -w_imag], axis=1),
            jnp.concatenate([w_imag, w_real], axis=1),
        ],
        axis=0,
    ).astype(in_dtype)                                     # (C_out, C_in)

    cost = pl.CostEstimate(
        flops=2 * C_out * C_in * N * L,
        transcendentals=0,
        bytes_accessed=(
            N * C_in * L * in_itemsize
            + N * C_out * L * out_itemsize
            + C_out * C_in * in_itemsize
        ),
    )
    cparams = dict(vmem_limit_bytes=32 * 1024 * 1024)

    if L >= small_l_fold_threshold:
        # ---- Native NCL layout: grid over (batch, L-tiles), no transposes. ----
        if block_l is None:
            bl = _pick_block_l(L, C_in, C_out, in_itemsize, out_itemsize,
                               vmem_block_budget_bytes)
        else:
            bl = min(int(block_l), L)
            assert bl == L or bl % 128 == 0, "block_l must be a multiple of 128"
        grid = (N, int(pl.cdiv(L, bl)))

        return pl.pallas_call(
            _complex_conv1d_kernel,
            out_shape=jax.ShapeDtypeStruct((N, C_out, L), out_dtype),
            grid=grid,
            in_specs=[
                pl.BlockSpec((C_out, C_in), lambda n, t: (0, 0)),
                pl.BlockSpec((pl.Squeezed(), C_in, bl), lambda n, t: (n, 0, t)),
            ],
            out_specs=pl.BlockSpec((pl.Squeezed(), C_out, bl), lambda n, t: (n, 0, t)),
            compiler_params=pltpu.CompilerParams(
                dimension_semantics=("parallel", "parallel"), **cparams
            ),
            cost_estimate=cost,
        )(w, x)

    # ---- Tiny-L fallback: fold batch into the lane axis (amortize overhead). ----
    nl = N * L
    x2 = jnp.transpose(x, (1, 0, 2)).reshape(C_in, nl)     # (C_in, N*L)
    if block_l is None:
        bl = _pick_block_l(nl, C_in, C_out, in_itemsize, out_itemsize,
                           vmem_block_budget_bytes)
    else:
        bl = min(int(block_l), nl)
        assert bl == nl or bl % 128 == 0, "block_l must be a multiple of 128"
    grid = (int(pl.cdiv(nl, bl)),)

    out2 = pl.pallas_call(
        _complex_conv1d_kernel,
        out_shape=jax.ShapeDtypeStruct((C_out, nl), out_dtype),
        grid=grid,
        in_specs=[
            pl.BlockSpec((C_out, C_in), lambda t: (0, 0)),
            pl.BlockSpec((C_in, bl), lambda t: (0, t)),
        ],
        out_specs=pl.BlockSpec((C_out, bl), lambda t: (0, t)),
        compiler_params=pltpu.CompilerParams(
            dimension_semantics=("parallel",), **cparams
        ),
        cost_estimate=cost,
    )(w, x2)
    return jnp.transpose(out2.reshape(C_out, N, L), (1, 0, 2))


def _reference(x, w_real, w_imag):
    """Plain-JAX (f32) reference mirroring the PyTorch forward."""
    x = x.astype(jnp.float32)
    w_real = w_real.astype(jnp.float32)
    w_imag = w_imag.astype(jnp.float32)
    ci_half = w_real.shape[1]
    real = x[:, :ci_half, :]
    imag = x[:, ci_half:, :]
    conv = lambda w, v: jnp.einsum("oi,nil->nol", w, v)
    real2real = conv(w_real, real)
    imag2imag = conv(w_imag, imag)
    real2imag = conv(w_imag, real)
    imag2real = conv(w_real, imag)
    return jnp.concatenate([real2real - imag2imag, real2imag + imag2real], axis=1)


if __name__ == "__main__":
    key = jax.random.PRNGKey(0)
    ks = jax.random.split(key, 9)

    # --- Case 1: module config ComplexConv1d(4, 4), tiny L -> batch-fold path ---
    in_channels, out_channels, kernel_size = 4, 4, 1
    ci_half, co_half = in_channels // 2, out_channels // 2
    N, L = 2, 16
    x = jax.random.normal(ks[0], (N, in_channels, L), dtype=jnp.float32)
    # nn.init.normal_(..., std=0.05) on (Co_half, Ci_half, kernel_size) weights
    w_real = 0.05 * jax.random.normal(ks[1], (co_half, ci_half, kernel_size), jnp.float32)
    w_imag = 0.05 * jax.random.normal(ks[2], (co_half, ci_half, kernel_size), jnp.float32)

    out = jax.block_until_ready(complex_conv1d(x, w_real, w_imag))
    ref = _reference(x, w_real[..., 0], w_imag[..., 0])
    assert out.shape == (N, out_channels, L)
    assert jnp.allclose(out, ref, atol=1e-5, rtol=1e-5), "mismatch vs reference (case 1)"

    # --- Case 2: long, non-tile-aligned L with a forced small tile ---
    # Exercises the native-layout path with a partial (masked) boundary block.
    in_c2, out_c2 = 8, 8
    ci2, co2 = in_c2 // 2, out_c2 // 2
    N2, L2 = 2, 8 * 512 + 64          # L2 % 512 != 0 -> last block is partial
    x_b = jax.random.normal(ks[3], (N2, in_c2, L2), dtype=jnp.float32)
    wr_b = 0.05 * jax.random.normal(ks[4], (co2, ci2), jnp.float32)
    wi_b = 0.05 * jax.random.normal(ks[5], (co2, ci2), jnp.float32)

    out_b = jax.block_until_ready(complex_conv1d(x_b, wr_b, wi_b, block_l=512))
    ref_b = _reference(x_b, wr_b, wi_b)
    assert out_b.shape == (N2, out_c2, L2)
    assert jnp.allclose(out_b, ref_b, atol=1e-5, rtol=1e-5), "mismatch vs reference (case 2)"

    # --- Case 3: bf16 activations / weights, auto tile (native path) ---
    N3, L3 = 2, 1024
    x_c = jax.random.normal(ks[6], (N3, in_c2, L3), jnp.float32).astype(jnp.bfloat16)
    wr_c = 0.05 * jax.random.normal(ks[7], (co2, ci2), jnp.float32)
    wi_c = 0.05 * jax.random.normal(ks[8], (co2, ci2), jnp.float32)

    out_c = jax.block_until_ready(complex_conv1d(x_c, wr_c, wi_c))
    ref_c = _reference(x_c, wr_c, wi_c)
    assert out_c.dtype == jnp.bfloat16 and out_c.shape == (N3, out_c2, L3)
    assert jnp.allclose(out_c.astype(jnp.float32), ref_c, atol=2e-2, rtol=2e-2), \
        "mismatch vs reference (case 3, bf16)"

    print("KERNEL_OK")
</pallas_src>

<mosaic_0001>
module attributes {stable_mosaic.version = 11 : i64} {
  func.func @_complex_conv1d_kernel(%arg0: i32, %arg1: memref<4x4xf32, #tpu.memory_space<vmem>>, %arg2: memref<4x32xf32, #tpu.memory_space<vmem>>, %arg3: memref<4x32xf32, #tpu.memory_space<vmem>>) attributes {dimension_semantics = [#tpu.dimension_semantics<parallel>], iteration_bounds = array<i64: 1>, scalar_prefetch = 0 : i64, scratch_operands = 0 : i64, tpu.core_type = #tpu.core_type<tc>, window_params = [{pipeline_mode = #tpu.pipeline_mode<synchronous>, transform_indices = @transform_0, window_bounds = array<i64: 4, 4>}, {transform_indices = @transform_1, window_bounds = array<i64: 4, 32>}, {transform_indices = @transform_2, window_bounds = array<i64: 4, 32>}]} {
    %c0 = arith.constant 0 : index
    %c0_0 = arith.constant 0 : index
    %0 = vector.load %arg1[%c0, %c0_0] : memref<4x4xf32, #tpu.memory_space<vmem>>, vector<4x4xf32>
    %c0_1 = arith.constant 0 : index
    %c0_2 = arith.constant 0 : index
    %1 = vector.load %arg2[%c0_1, %c0_2] : memref<4x32xf32, #tpu.memory_space<vmem>>, vector<4x32xf32>
    %cst = arith.constant dense<0.000000e+00> : vector<4x32xf32>
    %2 = tpu.matmul %0, %1, %cst {dimension_numbers = #tpu.dot_dimension_numbers<[1], [0], [0], [1], [0, 0, 1, 1], [], []>} : vector<4x4xf32>, vector<4x32xf32>, vector<4x32xf32> -> vector<4x32xf32>
    %c0_3 = arith.constant 0 : index
    %c0_4 = arith.constant 0 : index
    %3 = vector.load %arg3[%c0_3, %c0_4] : memref<4x32xf32, #tpu.memory_space<vmem>>, vector<4x32xf32>
    tpu.vector_store %arg3[%c0_3, %c0_4], %2 {strides = array<i32>} : memref<4x32xf32, #tpu.memory_space<vmem>>, vector<4x32xf32>,
    return
  }
  func.func @transform_0(%arg0: i32) -> (i32, i32) {
    %c0_i32 = arith.constant 0 : i32
    %c0_i32_0 = arith.constant 0 : i32
    %c0_i32_1 = arith.constant 0 : i32
    return %c0_i32, %c0_i32_0 : i32, i32
  }
  func.func @transform_1(%arg0: i32) -> (i32, i32) {
    %c0_i32 = arith.constant 0 : i32
    %c0_i32_0 = arith.constant 0 : i32
    return %c0_i32, %arg0 : i32, i32
  }
  func.func @transform_2(%arg0: i32) -> (i32, i32) {
    %c0_i32 = arith.constant 0 : i32
    %c0_i32_0 = arith.constant 0 : i32
    return %c0_i32, %arg0 : i32, i32
  }
}

</mosaic_0001>

<llo_original>
// kernel: tpu_custom_call.1
$region0: #{tpu_custom_call.1}
  #allocation0 [shape = 'u32[]', space=smem, size = 0x4, offset = 0x4, fixed_abs, tag = 'smem constant byte address 0x4 - core index']
  #allocation1 [shape = 'u32[144,128]{1,0:T(1,128)}', space=vmem, size = 0x12000, scoped, tag = 'internal scratch']
  %s0 = inlined_call_operand.hbm [shape: f32[4,4], index: 0, kind: input, shape index: {}]
  %s1 = inlined_call_operand.hbm [shape: f32[4,32], index: 1, kind: input, shape index: {}]
  %s2 = inlined_call_operand.hbm [shape: f32[4,32], index: 2, kind: output, shape index: {}]
  %s3 = sld [smem:[#allocation0]]
  $region26: #{tpu_custom_call.1} parent=0
    _
  %s5 = ssub.s32 1, %s3
  %s6 = scalar_select 0, %s5, %s3
  $region1: #{tpu_custom_call.1} parent=0
    #allocation2 [shape = 'u8[2048]{0}', space=vmem, size = 0x800, scoped, tag = 'input window, operand 0, single buffered']
    #allocation3 [shape = 's32[1]{0}', space=sflag, size = 0x4, scoped, tag = 'scoped memory for tpu_custom_call.1']
    #allocation4 [shape = 's32[1]{0}', space=sflag, size = 0x4, scoped, tag = 'scoped memory for tpu_custom_call.1']
    #allocation5 [shape = 'u8[2048]{0}', space=vmem, size = 0x800, scoped, tag = 'input window, operand 1, single buffered']
    #allocation6 [shape = 's32[1]{0}', space=sflag, size = 0x4, scoped, tag = 'scoped memory for tpu_custom_call.1']
    #allocation7 [shape = 'u8[2048]{0}', space=vmem, size = 0x800, scoped, tag = 'output window, operand 0, single buffered']
    %7 = vsyncpa [#allocation3], 0
    %8 = vsyncpa [#allocation6], 0
    %9 = vsyncpa [#allocation4], 0
    // Predicated region
    $region2: #{tpu_custom_call.1} parent=1 // pred_check
      _
    $region3: #{tpu_custom_call.1} parent=1 // pred_check_branch
      %11 = sbr.rel (0) target = $region5
    $region4: #{tpu_custom_call.1} parent=1 // pred_region
      %s13 = ssub.s32 64, 64
      %14 = vsyncadd [#allocation3], %s13
      %s16 = sshll.u32 [#allocation2], 4
      %s17 = int_to_ptr.vmem [resolvable:$true] %s16
      %19 = dma.hbm_to_vmem [thread:$0]  %s0, 64, %s17, [#allocation3]
    $region5: #{tpu_custom_call.1} parent=1 // pred_fallthru
      _
    // Predicated region
    $region6: #{tpu_custom_call.1} parent=1 // pred_check
      _
    $region7: #{tpu_custom_call.1} parent=1 // pred_check_branch
      %21 = sbr.rel (0) target = $region9
    $region8: #{tpu_custom_call.1} parent=1 // pred_region
      %s23 = ssub.s32 64, 64
      %24 = vsyncadd [#allocation6], %s23
      %s26 = sshll.u32 [#allocation5], 4
      %s27 = int_to_ptr.vmem [resolvable:$true] %s26
      %29 = dma.hbm_to_vmem [thread:$0]  %s1, 64, %s27, [#allocation6]
    $region9: #{tpu_custom_call.1} parent=1 // pred_fallthru
      _
    // Predicated region
    $region10: #{tpu_custom_call.1} parent=1 // pred_check
      _
    $region11: #{tpu_custom_call.1} parent=1 // pred_check_branch
      %31 = sbr.rel (0) target = $region13
    $region12: #{tpu_custom_call.1} parent=1 // pred_region
      %32 = dma.done [#allocation3], 64
    $region13: #{tpu_custom_call.1} parent=1 // pred_fallthru
      _
    // Predicated region
    $region14: #{tpu_custom_call.1} parent=1 // pred_check
      _
    $region15: #{tpu_custom_call.1} parent=1 // pred_check_branch
      %34 = sbr.rel (0) target = $region17
    $region16: #{tpu_custom_call.1} parent=1 // pred_region
      %35 = dma.done [#allocation6], 64
    $region17: #{tpu_custom_call.1} parent=1 // pred_fallthru
      _
    %v36 = vld [vmem:[#allocation2] sm:$0xf]
    %v37 = vld [vmem:[#allocation5] sm:$0xf]
    %vm38 = vcmask 31744
    %v40 = vsel %vm38, %v36, 0
    %vm42 = vcmask 1043456
    %v44 = vsel %vm42, %v37, 0
    %46 = vmatprep.subr.mxu0 0.0
    %47 = vmatpush1.msra.mxu0 %v44
    %48 = vmatprep.subr.mxu0 0.0
    %49 = vmatpush1.msra.mxu0 0.0
    %50 = vmatprep.subr.mxu0 0.0
    %51 = vmatpush1.msra.mxu0 0.0
    %52 = vmatprep.subr.mxu0 0.0
    %53 = vmatpush1.msra.mxu0 0.0
    %54 = vmatprep.subr.mxu0 0.0
    %55 = vmatpush1.msra.mxu0 0.0
    %56 = vmatprep.subr.mxu0 0.0
    %57 = vmatpush1.msra.mxu0 0.0
    %58 = vmatprep.subr.mxu0 0.0
    %59 = vmatpush1.msra.mxu0 0.0
    %60 = vmatprep.subr.mxu0 0.0
    %61 = vmatpush1.msra.mxu0 0.0
    %62 = vmatprep.subr.mxu0 0.0
    %63 = vmatpush1.msra.mxu0 0.0
    %64 = vmatprep.subr.mxu0 0.0
    %65 = vmatpush1.msra.mxu0 0.0
    %66 = vmatprep.subr.mxu0 0.0
    %67 = vmatpush1.msra.mxu0 0.0
    %68 = vmatprep.subr.mxu0 0.0
    %69 = vmatpush1.msra.mxu0 0.0
    %70 = vmatprep.subr.mxu0 0.0
    %71 = vmatpush1.msra.mxu0 0.0
    %72 = vmatprep.subr.mxu0 0.0
    %73 = vmatpush1.msra.mxu0 0.0
    %74 = vmatprep.subr.mxu0 0.0
    %75 = vmatpush1.msra.mxu0 0.0
    %76 = vmatprep.subr.mxu0 0.0
    %77 = vmatpush1.msra.mxu0 0.0
    %78 = vmatprep.subr.mxu0 0.0
    %79 = vmatpush1.msra.mxu0 0.0
    %80 = vmatprep.subr.mxu0 0.0
    %81 = vmatpush1.msra.mxu0 0.0
    %82 = vmatprep.subr.mxu0 0.0
    %83 = vmatpush1.msra.mxu0 0.0
    %84 = vmatprep.subr.mxu0 0.0
    %85 = vmatpush1.msra.mxu0 0.0
    %86 = vmatprep.subr.mxu0 0.0
    %87 = vmatpush1.msra.mxu0 0.0
    %88 = vmatprep.subr.mxu0 0.0
    %89 = vmatpush1.msra.mxu0 0.0
    %90 = vmatprep.subr.mxu0 0.0
    %91 = vmatpush1.msra.mxu0 0.0
    %92 = vmatprep.subr.mxu0 0.0
    %93 = vmatpush1.msra.mxu0 0.0
    %94 = vmatprep.subr.mxu0 0.0
    %95 = vmatpush1.msra.mxu0 0.0
    %96 = vmatprep.subr.mxu0 0.0
    %97 = vmatpush1.msra.mxu0 0.0
    %98 = vmatprep.subr.mxu0 0.0
    %99 = vmatpush1.msra.mxu0 0.0
    %100 = vmatprep.subr.mxu0 0.0
    %101 = vmatpush1.msra.mxu0 0.0
    %102 = vmatprep.subr.mxu0 0.0
    %103 = vmatpush1.msra.mxu0 0.0
    %104 = vmatprep.subr.mxu0 0.0
    %105 = vmatpush1.msra.mxu0 0.0
    %106 = vmatprep.subr.mxu0 0.0
    %107 = vmatpush1.msra.mxu0 0.0
    %108 = vmatprep.subr.mxu0 0.0
    %109 = vmatpush1.msra.mxu0 0.0
    %110 = vmatprep.mubr.f32.mxu0 0.0
    %111 = vmatmul.mubr.f32.gmra.mrb[0].mxu0 %v40
    %v112 = vpop.f32.mrb[0].mxu0
    %v113 = vadd.f32 0.0, %v112
    %v114 = vpop.f32.mrb[0].mxu0
    %115 = vdwg.mxu0
    %vm116 = vcmask 257024
    %117 = vst.msk [vmem:[#allocation7] sm:$0xf] %vm116, %v113
    // Predicated region
    $region18: #{tpu_custom_call.1} parent=1 // pred_check
      _
    $region19: #{tpu_custom_call.1} parent=1 // pred_check_branch
      %119 = sbr.rel (0) target = $region21
    $region20: #{tpu_custom_call.1} parent=1 // pred_region
      %s121 = ssub.s32 64, 64
      %122 = vsyncadd [#allocation4], %s121
      %s124 = sshll.u32 [#allocation7], 4
      %s125 = int_to_ptr.vmem [resolvable:$true] %s124
      %127 = dma.vmem_to_hbm [thread:$0]  %s125, 64, %s2, [#allocation4]
    $region21: #{tpu_custom_call.1} parent=1 // pred_fallthru
      _
    // Predicated region
    $region22: #{tpu_custom_call.1} parent=1 // pred_check
      _
    $region23: #{tpu_custom_call.1} parent=1 // pred_check_branch
      %129 = sbr.rel (0) target = $region25
    $region24: #{tpu_custom_call.1} parent=1 // pred_region
      %130 = dma.done [#allocation4], 64
    $region25: #{tpu_custom_call.1} parent=1 // pred_fallthru
      _
    %131 = vsyncpa [#allocation3], 1
    %132 = vsyncpa [#allocation6], 1
    %133 = vsyncpa [#allocation4], 1

</llo_original>
